<compile_context>
chip_gen: v7x
topology: tpu7x:2x2x1
jax: 0.10.0
libtpu: 0.0.40
codegen_flags: <defaults>
</compile_context>

<pallas_src>
import functools
import math

import jax
import jax.numpy as jnp
from jax import lax
from jax.experimental import pallas as pl
from jax.experimental.pallas import tpu as pltpu


def _tpu_vmem_capacity_bytes():
    try:
        info = pltpu.get_tpu_info()
        cap = getattr(info, "vmem_capacity_bytes", None)
        if cap:
            return int(cap)
    except Exception:
        pass
    return 64 * 1024 * 1024  # conservative (v7x per-core VMEM)


_VMEM_CAP = _tpu_vmem_capacity_bytes()
_BIG_VMEM = _VMEM_CAP >= 96 * 1024 * 1024          # v5e/v6e: 128 MiB, v7x: 64 MiB
_VMEM_LIMIT = (48 if _BIG_VMEM else 36) * 1024 * 1024


def _aligned_divisor(dim, target, align):
    """Largest t <= min(target, dim) with t % align == 0 and dim % t == 0; else dim."""
    target = min(target, dim)
    t = (target // align) * align
    while t >= align:
        if dim % t == 0:
            return t
        t -= align
    return dim


# ---------------------------------------------------------------------------
# Flash-style NT-Xent over (row_block, col_block) tiles, normalization fused
# ---------------------------------------------------------------------------
def _ntxent_flash_kernel(zr_ref, zp_ref, zc_ref, out_ref,
                         m_sc, l_sc, pos_sc, zrn_sc,
                         *, inv_sqrt_temp, b_real, b_pad, padded):
    i = pl.program_id(0)
    j = pl.program_id(1)
    n_col = pl.num_programs(1)
    tr = zr_ref.shape[0]
    tc = zc_ref.shape[0]
    row0 = i * tr
    col0 = j * tc

    @pl.when(j == 0)
    def _init():
        m_sc[...] = jnp.full_like(m_sc, -jnp.inf)
        l_sc[...] = jnp.zeros_like(l_sc)
        # Normalize query + partner rows once per row block (O(tr*D)); fold
        # 1/sqrt(temperature) into both so the MXU tile already carries 1/temp.
        # TODO(synk): torch CosineSimilarity clamps ||a||*||b|| jointly at 1e-8;
        # clamping each squared norm at 1e-8 differs only for near-zero rows.
        zr = zr_ref[...].astype(jnp.float32)
        zp = zp_ref[...].astype(jnp.float32)
        inv_r = lax.rsqrt(jnp.maximum(jnp.sum(zr * zr, axis=-1, keepdims=True), 1e-8))
        inv_p = lax.rsqrt(jnp.maximum(jnp.sum(zp * zp, axis=-1, keepdims=True), 1e-8))
        zrn = zr * (inv_r * inv_sqrt_temp)
        zpn = zp * (inv_p * inv_sqrt_temp)
        zrn_sc[...] = zrn.astype(zrn_sc.dtype)
        # positive logit: O(tr*D) row-wise dot with the partner rows
        pos_sc[...] = jnp.sum(zrn * zpn, axis=-1, keepdims=True)

    # keys: normalize + fold 1/sqrt(temperature) on the fly (O(tc*D) per tile)
    zc = zc_ref[...].astype(jnp.float32)
    inv_c = lax.rsqrt(jnp.maximum(jnp.sum(zc * zc, axis=-1, keepdims=True), 1e-8))
    zcn = (zc * (inv_c * inv_sqrt_temp)).astype(zrn_sc.dtype)

    # sim tile (tr, tc); transposed-RHS MXU form, no explicit transpose.
    s = lax.dot_general(zrn_sc[...], zcn,
                        dimension_numbers=(((1,), (1,)), ((), ())),
                        preferred_element_type=jnp.float32)

    if padded:
        # exclude zero-padded batch rows appearing as negatives (columns)
        c_glob = col0 + lax.broadcasted_iota(jnp.int32, (tr, tc), 1)
        col_valid = jnp.logical_or(
            c_glob < b_real,
            jnp.logical_and(c_glob >= b_pad, c_glob < b_pad + b_real))
        s = jnp.where(col_valid, s, jnp.float32(-1e30))

    def _update(s_val):
        m_prev = m_sc[...]
        m_new = jnp.maximum(m_prev, jnp.max(s_val, axis=-1, keepdims=True))
        p = jnp.exp(s_val - m_new)
        l_sc[...] = jnp.exp(m_prev - m_new) * l_sc[...] + jnp.sum(p, axis=-1,
                                                                  keepdims=True)
        m_sc[...] = m_new

    # Only tiles intersecting the global diagonal pay the self-sim masking cost.
    on_diag = jnp.logical_and(row0 < col0 + tc, col0 < row0 + tr)

    @pl.when(on_diag)
    def _masked():
        # single grid-invariant iota: diag when (c - r) == row0 - col0
        diff = (lax.broadcasted_iota(jnp.int32, (tr, tc), 1)
                - lax.broadcasted_iota(jnp.int32, (tr, tc), 0))
        _update(jnp.where(diff == (row0 - col0), jnp.float32(-1e30), s))

    @pl.when(jnp.logical_not(on_diag))
    def _unmasked():
        _update(s)

    @pl.when(j == n_col - 1)
    def _finalize():
        # CE(label=0, reduction='sum') per row: logsumexp_{k != row} sim - positive
        lse = m_sc[...] + jnp.log(l_sc[...])
        per_row = lse - pos_sc[...]                                  # (tr, 1)
        if padded:
            r_glob = row0 + lax.broadcasted_iota(jnp.int32, (tr, 1), 0)
            row_valid = jnp.logical_or(
                r_glob < b_real,
                jnp.logical_and(r_glob >= b_pad, r_glob < b_pad + b_real))
            per_row = jnp.where(row_valid, per_row, jnp.float32(0.0))
        blk = jnp.sum(per_row, axis=0, keepdims=True)                # (1, 1)
        out_ref[...] = jnp.broadcast_to(blk, out_ref.shape)          # unmasked store


def ntxent_loss(z_i, z_j, *, temperature, block_rows=None, block_cols=None):
    B, D = z_i.shape
    n_real = 2 * B
    b_pad = ((B + 7) // 8) * 8
    padded = b_pad != B
    if padded:
        zeros = jnp.zeros((b_pad - B, D), z_i.dtype)
        z_i = jnp.concatenate([z_i, zeros], axis=0)
        z_j = jnp.concatenate([z_j, zeros], axis=0)
    # Keep native dtype (bf16 inputs stay bf16 for the MXU); all LSE math is f32.
    z = jnp.concatenate([z_i, z_j], axis=0)
    N = 2 * b_pad

    # tile selection (smaller column tiles on 64-MiB-VMEM parts)
    tc_target = 512 if _BIG_VMEM else 256
    if block_cols is None:
        tc = (_aligned_divisor(N, tc_target, 128) if N % 128 == 0
              else _aligned_divisor(N, tc_target, 8))
    else:
        tc = block_cols
        if N % tc or tc % 8:
            raise ValueError("block_cols must divide 2*padded_batch and be 8-aligned")
    if block_rows is None:
        tr = _aligned_divisor(b_pad, 256, 8)
    else:
        tr = block_rows
        if b_pad % tr or tr % 8:
            raise ValueError("block_rows must divide padded_batch and be 8-aligned")

    nrb = N // tr
    ncb = N // tc
    shift = b_pad // tr          # partner block offset (positive pairs)

    kernel = functools.partial(
        _ntxent_flash_kernel,
        inv_sqrt_temp=float(1.0 / math.sqrt(temperature)),
        b_real=B, b_pad=b_pad, padded=padded)

    partial = pl.pallas_call(
        kernel,
        out_shape=jax.ShapeDtypeStruct((nrb * 8, 128), jnp.float32),
        grid_spec=pltpu.PrefetchScalarGridSpec(
            num_scalar_prefetch=0,
            grid=(nrb, ncb),
            in_specs=[
                pl.BlockSpec((tr, D), lambda i, j: (i, 0)),                 # queries
                pl.BlockSpec((tr, D), lambda i, j: ((i + shift) % nrb, 0)),  # partner
                pl.BlockSpec((tc, D), lambda i, j: (j, 0)),                 # keys
            ],
            out_specs=pl.BlockSpec((8, 128), lambda i, j: (i, 0)),
            scratch_shapes=[pltpu.VMEM((tr, 1), jnp.float32),   # m
                            pltpu.VMEM((tr, 1), jnp.float32),   # l
                            pltpu.VMEM((tr, 1), jnp.float32),   # positive logit
                            pltpu.VMEM((tr, D), z.dtype)],      # normalized queries
        ),
        compiler_params=pltpu.CompilerParams(
            dimension_semantics=("parallel", "arbitrary"),
            vmem_limit_bytes=_VMEM_LIMIT),
    )(z, z, z)

    # each (8,128) out block holds its row-block loss sum replicated 1024x
    total = jnp.sum(partial) / jnp.float32(8 * 128)
    return total / jnp.float32(n_real)


# ---------------------------------------------------------------------------
# Reconstruction MSE loss (tiled, reduction axis last)
# ---------------------------------------------------------------------------
def _mse_partial_kernel(y_ref, t_ref, out_ref, acc_sc):
    j = pl.program_id(1)

    @pl.when(j == 0)
    def _init():
        acc_sc[...] = jnp.zeros_like(acc_sc)

    d = y_ref[...].astype(jnp.float32) - t_ref[...].astype(jnp.float32)
    acc_sc[...] += jnp.sum(d * d, axis=-1, keepdims=True)

    @pl.when(j == pl.num_programs(1) - 1)
    def _finalize():
        blk = jnp.sum(acc_sc[...], axis=0, keepdims=True)            # (1, 1)
        out_ref[...] = jnp.broadcast_to(blk, out_ref.shape)


def recon_loss(y, t, *, reduction="mean", block_rows=None, block_cols=None):
    if reduction not in ("mean", "sum"):
        # TODO(synk): MSELoss reduction='none' (elementwise output) not implemented.
        raise NotImplementedError("only 'mean' and 'sum' reductions are supported")
    if y.ndim != 2:
        y = y.reshape(y.shape[0], -1)
        t = t.reshape(t.shape[0], -1)
    B, M = y.shape

    tc_target = 4096 if _BIG_VMEM else 2048    # bigger HBM-roofline tiles on 128-MiB parts
    if block_cols is not None:
        tc = block_cols
    else:
        tc = _aligned_divisor(M, tc_target, 128) if M % 128 == 0 else M
    if block_rows is not None:
        tr = block_rows
    else:
        tr_target = 256
        if tc * tr_target * 4 > 8 * 1024 * 1024:
            tr_target = max(8, ((8 * 1024 * 1024) // (tc * 4)) // 8 * 8)
        tr = _aligned_divisor(B, tr_target, 8)
    if B % tr or M % tc:
        raise ValueError("block sizes must divide the array dims")
    nrb = B // tr

    partial = pl.pallas_call(
        _mse_partial_kernel,
        out_shape=jax.ShapeDtypeStruct((nrb * 8, 128), jnp.float32),
        grid_spec=pltpu.PrefetchScalarGridSpec(
            num_scalar_prefetch=0,
            grid=(nrb, M // tc),
            in_specs=[pl.BlockSpec((tr, tc), lambda i, j: (i, j)),
                      pl.BlockSpec((tr, tc), lambda i, j: (i, j))],
            out_specs=pl.BlockSpec((8, 128), lambda i, j: (i, 0)),
            scratch_shapes=[pltpu.VMEM((tr, 1), jnp.float32)],
        ),
        compiler_params=pltpu.CompilerParams(
            dimension_semantics=("parallel", "arbitrary"),
            vmem_limit_bytes=_VMEM_LIMIT),
    )(y, t)

    total = jnp.sum(partial) / jnp.float32(8 * 128)
    if reduction == "mean":
        total = total / jnp.float32(B * M)
    return total


# ---------------------------------------------------------------------------
# GammaContrastReconLoss forward
# ---------------------------------------------------------------------------
def gamma_contrast_recon_loss(z_i, z_j, y, t, *, gamma, temperature, reduction="mean",
                              contrast_blocks=(None, None), recon_blocks=(None, None)):
    """Returns (loss, loss_contrast, loss_recon) matching the PyTorch module."""
    cb_r, cb_c = contrast_blocks
    rb_r, rb_c = recon_blocks
    if gamma < 1e-10:
        lr = recon_loss(y, t, reduction=reduction, block_rows=rb_r, block_cols=rb_c)
        return lr, jnp.float32(0.0), lr
    elif abs(1.0 - gamma) < 1e-10:
        lc = ntxent_loss(z_i, z_j, temperature=temperature,
                         block_rows=cb_r, block_cols=cb_c)
        return lc, lc, jnp.float32(0.0)
    else:
        lc = ntxent_loss(z_i, z_j, temperature=temperature,
                         block_rows=cb_r, block_cols=cb_c)
        lr = recon_loss(y, t, reduction=reduction, block_rows=rb_r, block_cols=rb_c)
        loss = gamma * lc + (1.0 - gamma) * lr
        return loss, lc, lr


# ---------------------------------------------------------------------------
# Pure-JAX reference (mirrors the PyTorch math) for a correctness check
# ---------------------------------------------------------------------------
def _reference(z_i, z_j, y, t, *, gamma, temperature):
    z = jnp.concatenate([z_i, z_j], axis=0).astype(jnp.float32)
    N = z.shape[0]
    B = z_i.shape[0]
    norms = jnp.sqrt(jnp.sum(z * z, axis=-1, keepdims=True))
    sim = (z @ z.T) / jnp.maximum(norms * norms.T, 1e-8) / temperature
    idx = jnp.arange(N)
    pos = sim[idx, (idx + B) % N]
    neg = jnp.where(jnp.eye(N, dtype=bool), -jnp.inf, sim)
    lse = jax.scipy.special.logsumexp(neg, axis=-1)
    lc = jnp.sum(lse - pos) / N
    lr = jnp.mean((y.astype(jnp.float32) - t.astype(jnp.float32)) ** 2)
    return gamma * lc + (1.0 - gamma) * lr, lc, lr


if __name__ == "__main__":
    key = jax.random.PRNGKey(0)
    k1, k2, k3, k4, k5, k6, k7, k8 = jax.random.split(key, 8)

    # --- case 1: aligned batch, explicit small tiles (multi-step accumulation) ---
    batch_size, rep_dim, input_size = 64, 32, 256
    gamma, temperature = 0.5, 0.1
    z_i = jax.random.normal(k1, (batch_size, rep_dim), dtype=jnp.float32)
    z_j = jax.random.normal(k2, (batch_size, rep_dim), dtype=jnp.float32)
    y = jax.random.normal(k3, (batch_size, input_size), dtype=jnp.float32)
    t = jax.random.normal(k4, (batch_size, input_size), dtype=jnp.float32)

    loss, loss_c, loss_r = gamma_contrast_recon_loss(
        z_i, z_j, y, t, gamma=gamma, temperature=temperature, reduction="mean",
        contrast_blocks=(32, 64),    # exercises masked + unmasked diagonal branches
        recon_blocks=(32, 128))      # exercises multi-step MSE accumulation
    jax.block_until_ready((loss, loss_c, loss_r))

    ref_loss, ref_c, ref_r = _reference(z_i, z_j, y, t, gamma=gamma,
                                        temperature=temperature)
    assert jnp.allclose(loss_c, ref_c, rtol=2e-3, atol=1e-3), (loss_c, ref_c)
    assert jnp.allclose(loss_r, ref_r, rtol=2e-3, atol=1e-3), (loss_r, ref_r)
    assert jnp.allclose(loss, ref_loss, rtol=2e-3, atol=1e-3), (loss, ref_loss)

    # --- case 2: non-8-aligned batch (exercises the padding/masking path) ---
    b2, d2, m2 = 6, 32, 80
    z_i2 = jax.random.normal(k5, (b2, d2), dtype=jnp.float32)
    z_j2 = jax.random.normal(k6, (b2, d2), dtype=jnp.float32)
    y2 = jax.random.normal(k7, (b2, m2), dtype=jnp.float32)
    t2 = jax.random.normal(k8, (b2, m2), dtype=jnp.float32)

    loss2, loss2_c, loss2_r = gamma_contrast_recon_loss(
        z_i2, z_j2, y2, t2, gamma=0.3, temperature=temperature, reduction="mean")
    jax.block_until_ready((loss2, loss2_c, loss2_r))

    ref2_loss, ref2_c, ref2_r = _reference(z_i2, z_j2, y2, t2, gamma=0.3,
                                           temperature=temperature)
    assert jnp.allclose(loss2_c, ref2_c, rtol=2e-3, atol=1e-3), (loss2_c, ref2_c)
    assert jnp.allclose(loss2_r, ref2_r, rtol=2e-3, atol=1e-3), (loss2_r, ref2_r)
    assert jnp.allclose(loss2, ref2_loss, rtol=2e-3, atol=1e-3), (loss2, ref2_loss)

    print("KERNEL_OK")
</pallas_src>

<mosaic_0001>
module attributes {stable_mosaic.version = 11 : i64} {
  func.func @_ntxent_flash_kernel(%arg0: i32, %arg1: i32, %arg2: memref<32x32xf32, #tpu.memory_space<vmem>>, %arg3: memref<32x32xf32, #tpu.memory_space<vmem>>, %arg4: memref<64x32xf32, #tpu.memory_space<vmem>>, %arg5: memref<8x128xf32, #tpu.memory_space<vmem>>, %arg6: memref<32x1xf32, #tpu.memory_space<vmem>>, %arg7: memref<32x1xf32, #tpu.memory_space<vmem>>, %arg8: memref<32x1xf32, #tpu.memory_space<vmem>>, %arg9: memref<32x32xf32, #tpu.memory_space<vmem>>) attributes {dimension_semantics = [#tpu.dimension_semantics<parallel>, #tpu.dimension_semantics<arbitrary>], iteration_bounds = array<i64: 4, 2>, scalar_prefetch = 0 : i64, scratch_operands = 4 : i64, tpu.core_type = #tpu.core_type<tc>, window_params = [{transform_indices = @transform_0, window_bounds = array<i64: 32, 32>}, {transform_indices = @transform_1, window_bounds = array<i64: 32, 32>}, {transform_indices = @transform_2, window_bounds = array<i64: 64, 32>}, {transform_indices = @transform_3, window_bounds = array<i64: 8, 128>}]} {
    %c32_i32 = arith.constant 32 : i32
    %0 = arith.muli %arg0, %c32_i32 : i32
    %c64_i32 = arith.constant 64 : i32
    %1 = arith.muli %arg1, %c64_i32 : i32
    %c0_i32 = arith.constant 0 : i32
    %2 = arith.cmpi eq, %arg1, %c0_i32 : i32
    %3 = arith.extui %2 : i1 to i32
    %c0_i32_0 = arith.constant 0 : i32
    %4 = arith.cmpi ne, %3, %c0_i32_0 : i32
    scf.if %4 {
      %cst_12 = arith.constant 0xFF800000 : f32
      %31 = vector.broadcast %cst_12 : f32 to vector<32x1xf32>
      %c0_13 = arith.constant 0 : index
      %c0_14 = arith.constant 0 : index
      %32 = vector.load %arg6[%c0_13, %c0_14] : memref<32x1xf32, #tpu.memory_space<vmem>>, vector<32x1xf32>
      tpu.vector_store %arg6[%c0_13, %c0_14], %31 {strides = array<i32>} : memref<32x1xf32, #tpu.memory_space<vmem>>, vector<32x1xf32>,
      %cst_15 = arith.constant 0.000000e+00 : f32
      %33 = vector.broadcast %cst_15 : f32 to vector<32x1xf32>
      %c0_16 = arith.constant 0 : index
      %c0_17 = arith.constant 0 : index
      %34 = vector.load %arg7[%c0_16, %c0_17] : memref<32x1xf32, #tpu.memory_space<vmem>>, vector<32x1xf32>
      tpu.vector_store %arg7[%c0_16, %c0_17], %33 {strides = array<i32>} : memref<32x1xf32, #tpu.memory_space<vmem>>, vector<32x1xf32>,
      %c0_18 = arith.constant 0 : index
      %c0_19 = arith.constant 0 : index
      %35 = vector.load %arg2[%c0_18, %c0_19] : memref<32x32xf32, #tpu.memory_space<vmem>>, vector<32x32xf32>
      %c0_20 = arith.constant 0 : index
      %c0_21 = arith.constant 0 : index
      %36 = vector.load %arg3[%c0_20, %c0_21] : memref<32x32xf32, #tpu.memory_space<vmem>>, vector<32x32xf32>
      %37 = arith.mulf %35, %35 : vector<32x32xf32>
      %cst_22 = arith.constant dense<0.000000e+00> : vector<32xf32>
      %38 = vector.multi_reduction <add>, %37, %cst_22 [1] : vector<32x32xf32> to vector<32xf32>
      %39 = vector.shape_cast %38 : vector<32xf32> to vector<32x1xf32>
      %cst_23 = arith.constant 9.99999993E-9 : f32
      %40 = vector.broadcast %cst_23 : f32 to vector<32x1xf32>
      %41 = arith.maximumf %39, %40 : vector<32x1xf32>
      %42 = math.rsqrt %41 : vector<32x1xf32>
      %43 = arith.mulf %36, %36 : vector<32x32xf32>
      %cst_24 = arith.constant dense<0.000000e+00> : vector<32xf32>
      %44 = vector.multi_reduction <add>, %43, %cst_24 [1] : vector<32x32xf32> to vector<32xf32>
      %45 = vector.shape_cast %44 : vector<32xf32> to vector<32x1xf32>
      %cst_25 = arith.constant 9.99999993E-9 : f32
      %46 = vector.broadcast %cst_25 : f32 to vector<32x1xf32>
      %47 = arith.maximumf %45, %46 : vector<32x1xf32>
      %48 = math.rsqrt %47 : vector<32x1xf32>
      %cst_26 = arith.constant 3.1622777 : f32
      %49 = vector.broadcast %cst_26 : f32 to vector<32x1xf32>
      %50 = arith.mulf %42, %49 : vector<32x1xf32>
      %51 = vector.broadcast %50 : vector<32x1xf32> to vector<32x32xf32>
      %52 = arith.mulf %35, %51 : vector<32x32xf32>
      %cst_27 = arith.constant 3.1622777 : f32
      %53 = vector.broadcast %cst_27 : f32 to vector<32x1xf32>
      %54 = arith.mulf %48, %53 : vector<32x1xf32>
      %55 = vector.broadcast %54 : vector<32x1xf32> to vector<32x32xf32>
      %56 = arith.mulf %36, %55 : vector<32x32xf32>
      %c0_28 = arith.constant 0 : index
      %c0_29 = arith.constant 0 : index
      %57 = vector.load %arg9[%c0_28, %c0_29] : memref<32x32xf32, #tpu.memory_space<vmem>>, vector<32x32xf32>
      tpu.vector_store %arg9[%c0_28, %c0_29], %52 {strides = array<i32>} : memref<32x32xf32, #tpu.memory_space<vmem>>, vector<32x32xf32>,
      %58 = arith.mulf %52, %56 : vector<32x32xf32>
      %cst_30 = arith.constant dense<0.000000e+00> : vector<32xf32>
      %59 = vector.multi_reduction <add>, %58, %cst_30 [1] : vector<32x32xf32> to vector<32xf32>
      %60 = vector.shape_cast %59 : vector<32xf32> to vector<32x1xf32>
      %c0_31 = arith.constant 0 : index
      %c0_32 = arith.constant 0 : index
      %61 = vector.load %arg8[%c0_31, %c0_32] : memref<32x1xf32, #tpu.memory_space<vmem>>, vector<32x1xf32>
      tpu.vector_store %arg8[%c0_31, %c0_32], %60 {strides = array<i32>} : memref<32x1xf32, #tpu.memory_space<vmem>>, vector<32x1xf32>,
    } else {
    }
    %c0 = arith.constant 0 : index
    %c0_1 = arith.constant 0 : index
    %5 = vector.load %arg4[%c0, %c0_1] : memref<64x32xf32, #tpu.memory_space<vmem>>, vector<64x32xf32>
    %6 = arith.mulf %5, %5 : vector<64x32xf32>
    %cst = arith.constant dense<0.000000e+00> : vector<64xf32>
    %7 = vector.multi_reduction <add>, %6, %cst [1] : vector<64x32xf32> to vector<64xf32>
    %8 = vector.shape_cast %7 : vector<64xf32> to vector<64x1xf32>
    %cst_2 = arith.constant 9.99999993E-9 : f32
    %9 = vector.broadcast %cst_2 : f32 to vector<64x1xf32>
    %10 = arith.maximumf %8, %9 : vector<64x1xf32>
    %11 = math.rsqrt %10 : vector<64x1xf32>
    %cst_3 = arith.constant 3.1622777 : f32
    %12 = vector.broadcast %cst_3 : f32 to vector<64x1xf32>
    %13 = arith.mulf %11, %12 : vector<64x1xf32>
    %14 = vector.broadcast %13 : vector<64x1xf32> to vector<64x32xf32>
    %15 = arith.mulf %5, %14 : vector<64x32xf32>
    %c0_4 = arith.constant 0 : index
    %c0_5 = arith.constant 0 : index
    %16 = vector.load %arg9[%c0_4, %c0_5] : memref<32x32xf32, #tpu.memory_space<vmem>>, vector<32x32xf32>
    %cst_6 = arith.constant dense<0.000000e+00> : vector<32x64xf32>
    %17 = tpu.matmul %16, %15, %cst_6 {dimension_numbers = #tpu.dot_dimension_numbers<[1], [1], [0], [0], [0, 0, 1, 0], [], []>} : vector<32x32xf32>, vector<64x32xf32>, vector<32x64xf32> -> vector<32x64xf32>
    %c64_i32_7 = arith.constant 64 : i32
    %18 = arith.addi %1, %c64_i32_7 : i32
    %19 = arith.cmpi slt, %0, %18 : i32
    %c32_i32_8 = arith.constant 32 : i32
    %20 = arith.addi %0, %c32_i32_8 : i32
    %21 = arith.cmpi slt, %1, %20 : i32
    %22 = arith.andi %19, %21 : i1
    %23 = arith.extui %22 : i1 to i32
    %c0_i32_9 = arith.constant 0 : i32
    %24 = arith.cmpi ne, %23, %c0_i32_9 : i32
    scf.if %24 {
      %31 = tpu.iota {dimensions = array<i32: 1>} : vector<32x64xi32>
      %32 = tpu.iota {dimensions = array<i32: 0>} : vector<32x64xi32>
      %33 = arith.subi %31, %32 : vector<32x64xi32>
      %34 = arith.subi %0, %1 : i32
      %35 = vector.broadcast %34 : i32 to vector<32x64xi32>
      %36 = arith.cmpi eq, %33, %35 : vector<32x64xi32>
      %cst_12 = arith.constant -1.000000e+30 : f32
      %37 = vector.broadcast %cst_12 : f32 to vector<32x64xf32>
      %38 = arith.select %36, %37, %17 : vector<32x64xi1>, vector<32x64xf32>
      %c0_13 = arith.constant 0 : index
      %c0_14 = arith.constant 0 : index
      %39 = vector.load %arg6[%c0_13, %c0_14] : memref<32x1xf32, #tpu.memory_space<vmem>>, vector<32x1xf32>
      %cst_15 = arith.constant dense<0xFF800000> : vector<32xf32>
      %40 = vector.multi_reduction <maximumf>, %38, %cst_15 [1] : vector<32x64xf32> to vector<32xf32>
      %41 = vector.shape_cast %40 : vector<32xf32> to vector<32x1xf32>
      %42 = arith.maximumf %39, %41 : vector<32x1xf32>
      %43 = vector.broadcast %42 : vector<32x1xf32> to vector<32x64xf32>
      %44 = arith.subf %38, %43 : vector<32x64xf32>
      %45 = math.exp %44 : vector<32x64xf32>
      %46 = arith.subf %39, %42 : vector<32x1xf32>
      %47 = math.exp %46 : vector<32x1xf32>
      %c0_16 = arith.constant 0 : index
      %c0_17 = arith.constant 0 : index
      %48 = vector.load %arg7[%c0_16, %c0_17] : memref<32x1xf32, #tpu.memory_space<vmem>>, vector<32x1xf32>
      %49 = arith.mulf %47, %48 : vector<32x1xf32>
      %cst_18 = arith.constant dense<0.000000e+00> : vector<32xf32>
      %50 = vector.multi_reduction <add>, %45, %cst_18 [1] : vector<32x64xf32> to vector<32xf32>
      %51 = vector.shape_cast %50 : vector<32xf32> to vector<32x1xf32>
      %52 = arith.addf %49, %51 : vector<32x1xf32>
      %c0_19 = arith.constant 0 : index
      %c0_20 = arith.constant 0 : index
      %53 = vector.load %arg7[%c0_19, %c0_20] : memref<32x1xf32, #tpu.memory_space<vmem>>, vector<32x1xf32>
      tpu.vector_store %arg7[%c0_19, %c0_20], %52 {strides = array<i32>} : memref<32x1xf32, #tpu.memory_space<vmem>>, vector<32x1xf32>,
      %c0_21 = arith.constant 0 : index
      %c0_22 = arith.constant 0 : index
      %54 = vector.load %arg6[%c0_21, %c0_22] : memref<32x1xf32, #tpu.memory_space<vmem>>, vector<32x1xf32>
      tpu.vector_store %arg6[%c0_21, %c0_22], %42 {strides = array<i32>} : memref<32x1xf32, #tpu.memory_space<vmem>>, vector<32x1xf32>,
    } else {
    }
    %true = arith.constant true
    %25 = arith.xori %22, %true : i1
    %26 = arith.extui %25 : i1 to i32
    %c0_i32_10 = arith.constant 0 : i32
    %27 = arith.cmpi ne, %26, %c0_i32_10 : i32
    scf.if %27 {
      %c0_12 = arith.constant 0 : index
      %c0_13 = arith.constant 0 : index
      %31 = vector.load %arg6[%c0_12, %c0_13] : memref<32x1xf32, #tpu.memory_space<vmem>>, vector<32x1xf32>
      %cst_14 = arith.constant dense<0xFF800000> : vector<32xf32>
      %32 = vector.multi_reduction <maximumf>, %17, %cst_14 [1] : vector<32x64xf32> to vector<32xf32>
      %33 = vector.shape_cast %32 : vector<32xf32> to vector<32x1xf32>
      %34 = arith.maximumf %31, %33 : vector<32x1xf32>
      %35 = vector.broadcast %34 : vector<32x1xf32> to vector<32x64xf32>
      %36 = arith.subf %17, %35 : vector<32x64xf32>
      %37 = math.exp %36 : vector<32x64xf32>
      %38 = arith.subf %31, %34 : vector<32x1xf32>
      %39 = math.exp %38 : vector<32x1xf32>
      %c0_15 = arith.constant 0 : index
      %c0_16 = arith.constant 0 : index
      %40 = vector.load %arg7[%c0_15, %c0_16] : memref<32x1xf32, #tpu.memory_space<vmem>>, vector<32x1xf32>
      %41 = arith.mulf %39, %40 : vector<32x1xf32>
      %cst_17 = arith.constant dense<0.000000e+00> : vector<32xf32>
      %42 = vector.multi_reduction <add>, %37, %cst_17 [1] : vector<32x64xf32> to vector<32xf32>
      %43 = vector.shape_cast %42 : vector<32xf32> to vector<32x1xf32>
      %44 = arith.addf %41, %43 : vector<32x1xf32>
      %c0_18 = arith.constant 0 : index
      %c0_19 = arith.constant 0 : index
      %45 = vector.load %arg7[%c0_18, %c0_19] : memref<32x1xf32, #tpu.memory_space<vmem>>, vector<32x1xf32>
      tpu.vector_store %arg7[%c0_18, %c0_19], %44 {strides = array<i32>} : memref<32x1xf32, #tpu.memory_space<vmem>>, vector<32x1xf32>,
      %c0_20 = arith.constant 0 : index
      %c0_21 = arith.constant 0 : index
      %46 = vector.load %arg6[%c0_20, %c0_21] : memref<32x1xf32, #tpu.memory_space<vmem>>, vector<32x1xf32>
      tpu.vector_store %arg6[%c0_20, %c0_21], %34 {strides = array<i32>} : memref<32x1xf32, #tpu.memory_space<vmem>>, vector<32x1xf32>,
    } else {
    }
    %c1_i32 = arith.constant 1 : i32
    %28 = arith.cmpi eq, %arg1, %c1_i32 : i32
    %29 = arith.extui %28 : i1 to i32
    %c0_i32_11 = arith.constant 0 : i32
    %30 = arith.cmpi ne, %29, %c0_i32_11 : i32
    scf.if %30 {
      %c0_12 = arith.constant 0 : index
      %c0_13 = arith.constant 0 : index
      %31 = vector.load %arg6[%c0_12, %c0_13] : memref<32x1xf32, #tpu.memory_space<vmem>>, vector<32x1xf32>
      %c0_14 = arith.constant 0 : index
      %c0_15 = arith.constant 0 : index
      %32 = vector.load %arg7[%c0_14, %c0_15] : memref<32x1xf32, #tpu.memory_space<vmem>>, vector<32x1xf32>
      %33 = math.log %32 : vector<32x1xf32>
      %34 = arith.addf %31, %33 : vector<32x1xf32>
      %c0_16 = arith.constant 0 : index
      %c0_17 = arith.constant 0 : index
      %35 = vector.load %arg8[%c0_16, %c0_17] : memref<32x1xf32, #tpu.memory_space<vmem>>, vector<32x1xf32>
      %36 = arith.subf %34, %35 : vector<32x1xf32>
      %cst_18 = arith.constant dense<0.000000e+00> : vector<1xf32>
      %37 = vector.multi_reduction <add>, %36, %cst_18 [0] : vector<32x1xf32> to vector<1xf32>
      %38 = vector.shape_cast %37 : vector<1xf32> to vector<1x1xf32>
      %39 = vector.shape_cast %38 : vector<1x1xf32> to vector<1x1xf32>
      %40 = vector.broadcast %39 : vector<1x1xf32> to vector<8x128xf32>
      %c0_19 = arith.constant 0 : index
      %c0_20 = arith.constant 0 : index
      %41 = vector.load %arg5[%c0_19, %c0_20] : memref<8x128xf32, #tpu.memory_space<vmem>>, vector<8x128xf32>
      tpu.vector_store %arg5[%c0_19, %c0_20], %40 {strides = array<i32>} : memref<8x128xf32, #tpu.memory_space<vmem>>, vector<8x128xf32>,
    } else {
    }
    return
  }
  func.func @transform_0(%arg0: i32, %arg1: i32) -> (i32, i32) {
    %c0_i32 = arith.constant 0 : i32
    %c0_i32_0 = arith.constant 0 : i32
    return %arg0, %c0_i32 : i32, i32
  }
  func.func @transform_1(%arg0: i32, %arg1: i32) -> (i32, i32) {
    %c2_i32 = arith.constant 2 : i32
    %0 = arith.addi %arg0, %c2_i32 : i32
    %c4_i32 = arith.constant 4 : i32
    %c0_i32 = arith.constant 0 : i32
    %1 = arith.cmpi eq, %c4_i32, %c0_i32 : i32
    %c1_i32 = arith.constant 1 : i32
    %2 = arith.select %1, %c1_i32, %c4_i32 : i32
    %3 = arith.remsi %0, %2 : i32
    %c0_i32_0 = arith.constant 0 : i32
    %4 = arith.cmpi ne, %3, %c0_i32_0 : i32
    %c0_i32_1 = arith.constant 0 : i32
    %5 = arith.cmpi slt, %3, %c0_i32_1 : i32
    %c0_i32_2 = arith.constant 0 : i32
    %6 = arith.cmpi slt, %2, %c0_i32_2 : i32
    %7 = arith.xori %5, %6 : i1
    %8 = arith.andi %7, %4 : i1
    %9 = arith.addi %3, %2 : i32
    %10 = arith.select %8, %9, %3 : i32
    %c0_i32_3 = arith.constant 0 : i32
    %c0_i32_4 = arith.constant 0 : i32
    return %10, %c0_i32_3 : i32, i32
  }
  func.func @transform_2(%arg0: i32, %arg1: i32) -> (i32, i32) {
    %c0_i32 = arith.constant 0 : i32
    %c0_i32_0 = arith.constant 0 : i32
    return %arg1, %c0_i32 : i32, i32
  }
  func.func @transform_3(%arg0: i32, %arg1: i32) -> (i32, i32) {
    %c0_i32 = arith.constant 0 : i32
    %c0_i32_0 = arith.constant 0 : i32
    return %arg0, %c0_i32 : i32, i32
  }
}

</mosaic_0001>

<llo_original>
// kernel: tpu_custom_call.1
$region0: #{tpu_custom_call.1}
  #allocation0 [shape = 'u32[]', space=smem, size = 0x4, offset = 0x4, fixed_abs, tag = 'smem constant byte address 0x4 - core index']
  #allocation1 [shape = 'u32[144,128]{1,0:T(1,128)}', space=vmem, size = 0x12000, scoped, tag = 'internal scratch']
  #allocation2 [shape = 'f32[32,1]{1,0:T(8,128)}', space=vmem, size = 0x4000, scoped, tag = 'scratch operand']
  #allocation3 [shape = 'f32[32,1]{1,0:T(8,128)}', space=vmem, size = 0x4000, scoped, tag = 'scratch operand']
  #allocation4 [shape = 'f32[32,1]{1,0:T(8,128)}', space=vmem, size = 0x4000, scoped, tag = 'scratch operand']
  #allocation5 [shape = 'f32[32,32]{1,0:T(8,128)}', space=vmem, size = 0x4000, scoped, tag = 'scratch operand']
  %s0 = inlined_call_operand.vmem [shape: f32[128,32], index: 0, kind: input, shape index: {}]
  %s1 = inlined_call_operand.vmem [shape: f32[128,32], index: 1, kind: input, shape index: {}]
  %s2 = inlined_call_operand.vmem [shape: f32[128,32], index: 2, kind: input, shape index: {}]
  %s3 = inlined_call_operand.hbm [shape: f32[32,128], index: 3, kind: output, shape index: {}]
  %s4 = sld [smem:[#allocation0]]
  $region61: #{tpu_custom_call.1} parent=0
    _
  %s6 = ssub.s32 1, %s4
  %s7 = scalar_select 0, %s6, %s4
  $region1: #{tpu_custom_call.1} parent=0
    #allocation6 [shape = 'u8[8192]{0}', space=vmem, size = 0x2000, scoped, tag = 'output window, operand 0']
    #allocation7 [shape = 's32[2]{0}', space=sflag, size = 0x8, scoped, tag = 'scoped memory for tpu_custom_call.1']
    %8 = vsyncpa [#allocation7], 0
    %s9 = scalar_lea.sflag [#allocation7], 1
    %10 = vsyncpa %s9, 0
    loop: start=0, step=1, limit=10
    $region2: #{tpu_custom_call.1} parent=1 // loop_pre_header
      _
    $region3: #{tpu_custom_call.1} parent=1 // loop_header
      %s12 = sphi 0, %s16
      %p13 = scmp.ge.s32.totalorder %s12, 10
      %s19 = sphi 0, %s31
      %s20 = sphi 0, %s27
      %s21 = sphi 0, %s19
      %s22 = sphi 0, %s20
      %s23 = sphi 0, %s21
      %s24 = sphi 0, %s22
      %s34 = sphi 0, %s36
      %s37 = sphi 0, %s34
      %s38 = sphi 0, %s37
      %s54 = sphi 0, %s38
      %s86 = sphi 0, %s88
      %s89 = sphi 0, %s86
      %s90 = sphi 0, %s89
      %s106 = sphi 0, %s90
      %s112 = sphi 0, %s114
      %s115 = sphi 0, %s112
      %s116 = sphi 0, %s115
      %s132 = sphi 0, %s116
      %s138 = sphi 0, %s140
      %s141 = sphi 0, %s138
      %s142 = sphi 0, %s141
      %s158 = sphi 0, %s142
    $region4: #{tpu_custom_call.1} parent=1 // loop_header_branch
      %15 = sbr.rel (%p13) target = $region8
    $region5: #{tpu_custom_call.1} parent=1 // loop_body
      %s17 = ssub.s32 %s12, 1
      %s18 = ssub.s32 %s12, 2
      %s25 = sadd.s32 1, %s20
      %p26 = scmp.ge.s32.totalorder %s25, 2
      %s27 = scalar_select %p26, 0, %s25
      %s28 = sadd.s32 1, %s19
      %s29 = scalar_select %p26, %s28, %s19
      %p30 = scmp.ge.s32.totalorder %s29, 4
      %s31 = scalar_select %p30, 0, %s29
      %s32 = ssub.s32 %s19, %s31
      %p33 = scmp.eq.s32.totalorder %s32, 0
      %s35 = sadd.s32 %s34, 1
      %s36 = scalar_select %p33, %s34, %s35
      %p39 = pneg %p33
      %p40 = scmp.eq.s32.totalorder %s12, 7
      %p41 = por %p39, %p40
      %p42 = scmp.ne.s32.totalorder %s34, %s37
      %p43 = scmp.eq.s32.totalorder %s12, 0
      %p44 = por %p42, %p43
      %p45 = scmp.ne.s32.totalorder %s34, %s37
      %p46 = scmp.eq.s32.totalorder %s17, 7
      %p47 = por %p45, %p46
      %p48 = scmp.ne.s32.totalorder %s37, %s38
      %p49 = scmp.eq.s32.totalorder %s17, 0
      %p50 = por %p48, %p49
      %p51 = scmp.ne.s32.totalorder %s37, %s38
      %p52 = scmp.eq.s32.totalorder %s18, 7
      %p53 = por %p51, %p52
      %p55 = scmp.ne.s32.totalorder %s38, %s54
      %p56 = scmp.eq.s32.totalorder %s18, 0
      %p57 = por %p55, %p56
      %s58 = sadd.s32 %s19, 2
      %p59 = scmp.lt.s32.totalorder %s58, 0
      %s60 = ssub.s32 0, %s58
      %s61 = scalar_select %p59, %s60, %s58
      %s62 = sand.u32 %s61, 3
      %s63 = ssub.s32 0, %s62
      %s64 = scalar_select %p59, %s63, %s62
      %p65 = scmp.ne.s32.totalorder %s64, 0
      %p66 = scmp.lt.s32.totalorder %s64, 0
      %p67 = pnand %p66, %p65
      %p68 = pneg %p67
      %s69 = sadd.s32 %s64, 4
      %s70 = scalar_select %p68, %s69, %s64
      %s71 = sadd.s32 %s31, 2
      %p72 = scmp.lt.s32.totalorder %s71, 0
      %s73 = ssub.s32 0, %s71
      %s74 = scalar_select %p72, %s73, %s71
      %s75 = sand.u32 %s74, 3
      %s76 = ssub.s32 0, %s75
      %s77 = scalar_select %p72, %s76, %s75
      %p78 = scmp.ne.s32.totalorder %s77, 0
      %p79 = scmp.lt.s32.totalorder %s77, 0
      %p80 = pnand %p79, %p78
      %p81 = pneg %p80
      %s82 = sadd.s32 %s77, 4
      %s83 = scalar_select %p81, %s82, %s77
      %s84 = ssub.s32 %s70, %s83
      %p85 = scmp.eq.s32.totalorder %s84, 0
      %s87 = sadd.s32 %s86, 1
      %s88 = scalar_select %p85, %s86, %s87
      %p91 = pneg %p85
      %p92 = scmp.eq.s32.totalorder %s12, 7
      %p93 = por %p91, %p92
      %p94 = scmp.ne.s32.totalorder %s86, %s89
      %p95 = scmp.eq.s32.totalorder %s12, 0
      %p96 = por %p94, %p95
      %p97 = scmp.ne.s32.totalorder %s86, %s89
      %p98 = scmp.eq.s32.totalorder %s17, 7
      %p99 = por %p97, %p98
      %p100 = scmp.ne.s32.totalorder %s89, %s90
      %p101 = scmp.eq.s32.totalorder %s17, 0
      %p102 = por %p100, %p101
      %p103 = scmp.ne.s32.totalorder %s89, %s90
      %p104 = scmp.eq.s32.totalorder %s18, 7
      %p105 = por %p103, %p104
      %p107 = scmp.ne.s32.totalorder %s90, %s106
      %p108 = scmp.eq.s32.totalorder %s18, 0
      %p109 = por %p107, %p108
      %s110 = ssub.s32 %s20, %s27
      %p111 = scmp.eq.s32.totalorder %s110, 0
      %s113 = sadd.s32 %s112, 1
      %s114 = scalar_select %p111, %s112, %s113
      %p117 = pneg %p111
      %p118 = scmp.eq.s32.totalorder %s12, 7
      %p119 = por %p117, %p118
      %p120 = scmp.ne.s32.totalorder %s112, %s115
      %p121 = scmp.eq.s32.totalorder %s12, 0
      %p122 = por %p120, %p121
      %p123 = scmp.ne.s32.totalorder %s112, %s115
      %p124 = scmp.eq.s32.totalorder %s17, 7
      %p125 = por %p123, %p124
      %p126 = scmp.ne.s32.totalorder %s115, %s116
      %p127 = scmp.eq.s32.totalorder %s17, 0
      %p128 = por %p126, %p127
      %p129 = scmp.ne.s32.totalorder %s115, %s116
      %p130 = scmp.eq.s32.totalorder %s18, 7
      %p131 = por %p129, %p130
      %p133 = scmp.ne.s32.totalorder %s116, %s132
      %p134 = scmp.eq.s32.totalorder %s18, 0
      %p135 = por %p133, %p134
      %s136 = ssub.s32 %s19, %s31
      %p137 = scmp.eq.s32.totalorder %s136, 0
      %s139 = sadd.s32 %s138, 1
      %s140 = scalar_select %p137, %s138, %s139
      %p143 = pneg %p137
      %p144 = scmp.eq.s32.totalorder %s12, 7
      %p145 = por %p143, %p144
      %p146 = scmp.ne.s32.totalorder %s138, %s141
      %p147 = scmp.eq.s32.totalorder %s12, 0
      %p148 = por %p146, %p147
      %p149 = scmp.ne.s32.totalorder %s138, %s141
      %p150 = scmp.eq.s32.totalorder %s17, 7
      %p151 = por %p149, %p150
      %p152 = scmp.ne.s32.totalorder %s141, %s142
      %p153 = scmp.eq.s32.totalorder %s17, 0
      %p154 = por %p152, %p153
      %p155 = scmp.ne.s32.totalorder %s141, %s142
      %p156 = scmp.eq.s32.totalorder %s18, 7
      %p157 = por %p155, %p156
      %p159 = scmp.ne.s32.totalorder %s142, %s158
      %p160 = scmp.eq.s32.totalorder %s18, 0
      %p161 = por %p159, %p160
      %p162 = scmp.le.s32.totalorder 1, %s12
      %p163 = scmp.lt.s32.totalorder %s12, 9
      %p164 = pnand %p162, %p163
      %p165 = pneg %p164
      // Predicated region
      $region9: #{tpu_custom_call.1} parent=5 // pred_check
        _
      $region10: #{tpu_custom_call.1} parent=5 // pred_check_branch
        %167 = sbr.rel (%p164) target = $region12
      $region11: #{tpu_custom_call.1} parent=5 // pred_region
        %s168 = ssub.s32 %s12, 1
      $region12: #{tpu_custom_call.1} parent=5 // pred_fallthru
        _
      %p169 = scmp.lt.s32.totalorder %s12, 8
      // Predicated region
      $region13: #{tpu_custom_call.1} parent=5 // pred_check
        %p170 = pneg %p169
      $region14: #{tpu_custom_call.1} parent=5 // pred_check_branch
        %172 = sbr.rel (%p170) target = $region16
      $region15: #{tpu_custom_call.1} parent=5 // pred_region
        // Predicated region
        $region17: #{tpu_custom_call.1} parent=15 // pred_check
          %p173 = pneg %p44
        $region18: #{tpu_custom_call.1} parent=15 // pred_check_branch
          %175 = sbr.rel (%p173) target = $region20
        $region19: #{tpu_custom_call.1} parent=15 // pred_region
          %s176 = smul.u32 4, %s19
          %p177 = scmp.lt.s32.totalorder %s176, 15
          %s178 = scalar_select %p177, %s176, 15
          %s179 = smul.addr %s178, 8
          %s180 = scalar_lea.vmem %s0, %s179
          %s181 = smul.u32 4, %s19
        $region20: #{tpu_custom_call.1} parent=15 // pred_fallthru
          _
        // Predicated region
        $region21: #{tpu_custom_call.1} parent=15 // pred_check
          %p182 = pneg %p96
        $region22: #{tpu_custom_call.1} parent=15 // pred_check_branch
          %184 = sbr.rel (%p182) target = $region24
        $region23: #{tpu_custom_call.1} parent=15 // pred_region
          %s185 = sadd.s32 %s19, 2
          %p186 = scmp.lt.s32.totalorder %s185, 0
          %s187 = ssub.s32 0, %s185
          %s188 = scalar_select %p186, %s187, %s185
          %s189 = sand.u32 %s188, 3
          %s190 = ssub.s32 0, %s189
          %s191 = scalar_select %p186, %s190, %s189
          %p192 = scmp.ne.s32.totalorder %s191, 0
          %p193 = scmp.lt.s32.totalorder %s191, 0
          %p194 = pnand %p193, %p192
          %p195 = pneg %p194
          %s196 = sadd.s32 %s191, 4
          %s197 = scalar_select %p195, %s196, %s191
          %s198 = smul.u32 4, %s197
          %p199 = scmp.lt.s32.totalorder %s198, 15
          %s200 = scalar_select %p199, %s198, 15
          %s201 = smul.addr %s200, 8
          %s202 = scalar_lea.vmem %s1, %s201
          %s203 = sadd.s32 %s19, 2
          %p204 = scmp.lt.s32.totalorder %s203, 0
          %s205 = ssub.s32 0, %s203
          %s206 = scalar_select %p204, %s205, %s203
          %s207 = sand.u32 %s206, 3
          %s208 = ssub.s32 0, %s207
          %s209 = scalar_select %p204, %s208, %s207
          %p210 = scmp.ne.s32.totalorder %s209, 0
          %p211 = scmp.lt.s32.totalorder %s209, 0
          %p212 = pnand %p211, %p210
          %p213 = pneg %p212
          %s214 = sadd.s32 %s209, 4
          %s215 = scalar_select %p213, %s214, %s209
          %s216 = smul.u32 4, %s215
        $region24: #{tpu_custom_call.1} parent=15 // pred_fallthru
          _
        // Predicated region
        $region25: #{tpu_custom_call.1} parent=15 // pred_check
          %p217 = pneg %p122
        $region26: #{tpu_custom_call.1} parent=15 // pred_check_branch
          %219 = sbr.rel (%p217) target = $region28
        $region27: #{tpu_custom_call.1} parent=15 // pred_region
          %s220 = smul.u32 8, %s20
          %p221 = scmp.lt.s32.totalorder %s220, 15
          %s222 = scalar_select %p221, %s220, 15
          %s223 = smul.addr %s222, 8
          %s224 = scalar_lea.vmem %s2, %s223
          %s225 = smul.u32 8, %s20
        $region28: #{tpu_custom_call.1} parent=15 // pred_fallthru
          _
      $region16: #{tpu_custom_call.1} parent=5 // pred_fallthru
        _
      %p226 = scmp.le.s32.totalorder 1, %s12
      %p227 = scmp.lt.s32.totalorder %s12, 9
      %p228 = pnand %p226, %p227
      %p229 = pneg %p228
      // Predicated region
      $region29: #{tpu_custom_call.1} parent=5 // pred_check
        _
      $region30: #{tpu_custom_call.1} parent=5 // pred_check_branch
        %231 = sbr.rel (%p228) target = $region32
      $region31: #{tpu_custom_call.1} parent=5 // pred_region
        %s232 = ssub.s32 %s12, 1
        %s233 = smul.u32 4, %s21
        %p234 = scmp.lt.s32.totalorder %s233, 15
        %s235 = scalar_select %p234, %s233, 15
        %s236 = smul.addr %s235, 8
        %s237 = scalar_lea.vmem %s0, %s236
        %p238 = pneg %p50
        %p239 = pneg %p47
        %s240 = sadd.s32 %s21, 2
        %p241 = scmp.lt.s32.totalorder %s240, 0
        %s242 = ssub.s32 0, %s240
        %s243 = scalar_select %p241, %s242, %s240
        %s244 = sand.u32 %s243, 3
        %s245 = ssub.s32 0, %s244
        %s246 = scalar_select %p241, %s245, %s244
        %p247 = scmp.ne.s32.totalorder %s246, 0
        %p248 = scmp.lt.s32.totalorder %s246, 0
        %p249 = pnand %p248, %p247
        %p250 = pneg %p249
        %s251 = sadd.s32 %s246, 4
        %s252 = scalar_select %p250, %s251, %s246
        %s253 = smul.u32 4, %s252
        %p254 = scmp.lt.s32.totalorder %s253, 15
        %s255 = scalar_select %p254, %s253, 15
        %s256 = smul.addr %s255, 8
        %s257 = scalar_lea.vmem %s1, %s256
        %p258 = pneg %p102
        %p259 = pneg %p99
        %s260 = smul.u32 8, %s22
        %p261 = scmp.lt.s32.totalorder %s260, 15
        %s262 = scalar_select %p261, %s260, 15
        %s263 = smul.addr %s262, 8
        %s264 = scalar_lea.vmem %s2, %s263
        %p265 = pneg %p128
        %p266 = pneg %p125
        %p267 = pneg %p154
        %p268 = pneg %p151
        %s269 = sand.u32 %s141, 1
        %s270 = scalar_lea.sflag [#allocation7], %s269
        %s271 = sand.u32 %s141, 1
        %s272 = smul.addr %s271, 8
        %s273 = scalar_lea.vmem [#allocation6], %s272
        %s274 = smul.u32 4, %s21
        %p275 = scmp.lt.s32.totalorder %s274, 15
        %s276 = scalar_select %p275, %s274, 15
        %s277 = smul.addr %s276, 8
        %s278 = scalar_lea.vmem %s0, %s277
        %s279 = smul.u32 4, %s21
        %s280 = sadd.s32 %s21, 2
        %p281 = scmp.lt.s32.totalorder %s280, 0
        %s282 = ssub.s32 0, %s280
        %s283 = scalar_select %p281, %s282, %s280
        %s284 = sand.u32 %s283, 3
        %s285 = ssub.s32 0, %s284
        %s286 = scalar_select %p281, %s285, %s284
        %p287 = scmp.ne.s32.totalorder %s286, 0
        %p288 = scmp.lt.s32.totalorder %s286, 0
        %p289 = pnand %p288, %p287
        %p290 = pneg %p289
        %s291 = sadd.s32 %s286, 4
        %s292 = scalar_select %p290, %s291, %s286
        %s293 = smul.u32 4, %s292
        %p294 = scmp.lt.s32.totalorder %s293, 15
        %s295 = scalar_select %p294, %s293, 15
        %s296 = smul.addr %s295, 8
        %s297 = scalar_lea.vmem %s1, %s296
        %s298 = sadd.s32 %s21, 2
        %p299 = scmp.lt.s32.totalorder %s298, 0
        %s300 = ssub.s32 0, %s298
        %s301 = scalar_select %p299, %s300, %s298
        %s302 = sand.u32 %s301, 3
        %s303 = ssub.s32 0, %s302
        %s304 = scalar_select %p299, %s303, %s302
        %p305 = scmp.ne.s32.totalorder %s304, 0
        %p306 = scmp.lt.s32.totalorder %s304, 0
        %p307 = pnand %p306, %p305
        %p308 = pneg %p307
        %s309 = sadd.s32 %s304, 4
        %s310 = scalar_select %p308, %s309, %s304
        %s311 = smul.u32 4, %s310
        %s312 = smul.u32 8, %s22
        %p313 = scmp.lt.s32.totalorder %s312, 15
        %s314 = scalar_select %p313, %s312, 15
        %s315 = smul.addr %s314, 8
        %s316 = scalar_lea.vmem %s2, %s315
        %s317 = smul.u32 8, %s22
        %s318 = smul.u32 %s21, 32
        %s319 = smul.u32 %s22, 64
        %p320 = scmp.eq.s32.totalorder %s22, 0
        // Predicated region
        $region33: #{tpu_custom_call.1} parent=31 // pred_check
          %p321 = pneg %p320
        $region34: #{tpu_custom_call.1} parent=31 // pred_check_branch
          %323 = sbr.rel (%p321) target = $region36
        $region35: #{tpu_custom_call.1} parent=31 // pred_region
          %vm324 = vcmask 7168
          %325 = vst.msk [vmem:[#allocation2] sm:$0xff] %vm324, -inf
          %326 = vst.msk [vmem:[#allocation2 + $0x8] sm:$0xff] %vm324, -inf
          %327 = vst.msk [vmem:[#allocation2 + $0x10] sm:$0xff] %vm324, -inf
          %328 = vst.msk [vmem:[#allocation2 + $0x18] sm:$0xff] %vm324, -inf
          %329 = vst.msk [vmem:[#allocation3] sm:$0xff] %vm324, 0.0
          %330 = vst.msk [vmem:[#allocation3 + $0x8] sm:$0xff] %vm324, 0.0
          %331 = vst.msk [vmem:[#allocation3 + $0x10] sm:$0xff] %vm324, 0.0
          %332 = vst.msk [vmem:[#allocation3 + $0x18] sm:$0xff] %vm324, 0.0
          %v333 = vld [vmem:[%s278] sm:$0xff]
          %v334 = vld [vmem:[%s278 + $0x8] sm:$0xff]
          %v335 = vld [vmem:[%s278 + $0x10] sm:$0xff]
          %v336 = vld [vmem:[%s278 + $0x18] sm:$0xff]
          %v337 = vld [vmem:[%s297] sm:$0xff]
          %v338 = vld [vmem:[%s297 + $0x8] sm:$0xff]
          %v339 = vld [vmem:[%s297 + $0x10] sm:$0xff]
          %v340 = vld [vmem:[%s297 + $0x18] sm:$0xff]
          %v341 = vmul.f32 %v333, %v333
          %v342 = vmul.f32 %v334, %v334
          %v343 = vmul.f32 %v335, %v335
          %v344 = vmul.f32 %v336, %v336
          %vm345 = vcmask 261120
          %v346 = vsel %vm345, %v341, 0.0
          %347 = vadd.xlane.f32.xlu0 %v346
          %v348 = vpop.xlane.xlu0 %347
          %v349 = vsel %vm345, %v342, 0.0
          %350 = vadd.xlane.f32.xlu0 %v349
          %v351 = vpop.xlane.xlu0 %350
          %v352 = vsel %vm345, %v343, 0.0
          %353 = vadd.xlane.f32.xlu0 %v352
          %v354 = vpop.xlane.xlu0 %353
          %v355 = vsel %vm345, %v344, 0.0
          %356 = vadd.xlane.f32.xlu0 %v355
          %v357 = vpop.xlane.xlu0 %356
          %v358 = vmax.f32 %v348, 1e-08
          %v359 = vmax.f32 %v351, 1e-08
          %v360 = vmax.f32 %v354, 1e-08
          %v361 = vmax.f32 %v357, 1e-08
          %v362 = vrsqrt.pop %v358
          %v363 = vrsqrt.pop %v359
          %v364 = vrsqrt.pop %v360
          %v365 = vrsqrt.pop %v361
          %v366 = vmul.f32 %v337, %v337
          %v367 = vmul.f32 %v338, %v338
          %v368 = vmul.f32 %v339, %v339
          %v369 = vmul.f32 %v340, %v340
          %v370 = vsel %vm345, %v366, 0.0
          %371 = vadd.xlane.f32.xlu0 %v370
          %v372 = vpop.xlane.xlu0 %371
          %v373 = vsel %vm345, %v367, 0.0
          %374 = vadd.xlane.f32.xlu0 %v373
          %v375 = vpop.xlane.xlu0 %374
          %v376 = vsel %vm345, %v368, 0.0
          %377 = vadd.xlane.f32.xlu0 %v376
          %v378 = vpop.xlane.xlu0 %377
          %v379 = vsel %vm345, %v369, 0.0
          %380 = vadd.xlane.f32.xlu0 %v379
          %v381 = vpop.xlane.xlu0 %380
          %v382 = vmax.f32 %v372, 1e-08
          %v383 = vmax.f32 %v375, 1e-08
          %v384 = vmax.f32 %v378, 1e-08
          %v385 = vmax.f32 %v381, 1e-08
          %v386 = vrsqrt.pop %v382
          %v387 = vrsqrt.pop %v383
          %v388 = vrsqrt.pop %v384
          %v389 = vrsqrt.pop %v385
          %v390 = vmul.f32 %v362, 3.1622777
          %v391 = vmul.f32 %v363, 3.1622777
          %v392 = vmul.f32 %v364, 3.1622777
          %v393 = vmul.f32 %v365, 3.1622777
          %v394 = vmul.f32 %v333, %v390
          %v395 = vmul.f32 %v334, %v391
          %v396 = vmul.f32 %v335, %v392
          %v397 = vmul.f32 %v336, %v393
          %v398 = vmul.f32 %v386, 3.1622777
          %v399 = vmul.f32 %v387, 3.1622777
          %v400 = vmul.f32 %v388, 3.1622777
          %v401 = vmul.f32 %v389, 3.1622777
          %v402 = vmul.f32 %v337, %v398
          %v403 = vmul.f32 %v338, %v399
          %v404 = vmul.f32 %v339, %v400
          %v405 = vmul.f32 %v340, %v401
          %406 = vst.msk [vmem:[#allocation5] sm:$0xff] %vm345, %v394
          %407 = vst.msk [vmem:[#allocation5 + $0x8] sm:$0xff] %vm345, %v395
          %408 = vst.msk [vmem:[#allocation5 + $0x10] sm:$0xff] %vm345, %v396
          %409 = vst.msk [vmem:[#allocation5 + $0x18] sm:$0xff] %vm345, %v397
          %v410 = vmul.f32 %v394, %v402
          %v411 = vmul.f32 %v395, %v403
          %v412 = vmul.f32 %v396, %v404
          %v413 = vmul.f32 %v397, %v405
          %v414 = vsel %vm345, %v410, 0.0
          %415 = vadd.xlane.f32.xlu0 %v414
          %v416 = vpop.xlane.xlu0 %415
          %v417 = vsel %vm345, %v411, 0.0
          %418 = vadd.xlane.f32.xlu0 %v417
          %v419 = vpop.xlane.xlu0 %418
          %v420 = vsel %vm345, %v412, 0.0
          %421 = vadd.xlane.f32.xlu0 %v420
          %v422 = vpop.xlane.xlu0 %421
          %v423 = vsel %vm345, %v413, 0.0
          %424 = vadd.xlane.f32.xlu0 %v423
          %v425 = vpop.xlane.xlu0 %424
          %426 = vst.msk [vmem:[#allocation4] sm:$0xff] %vm324, %v416
          %427 = vst.msk [vmem:[#allocation4 + $0x8] sm:$0xff] %vm324, %v419
          %428 = vst.msk [vmem:[#allocation4 + $0x10] sm:$0xff] %vm324, %v422
          %429 = vst.msk [vmem:[#allocation4 + $0x18] sm:$0xff] %vm324, %v425
        $region36: #{tpu_custom_call.1} parent=31 // pred_fallthru
          _
        %v430 = vld [vmem:[%s316] sm:$0xff]
        %v431 = vld [vmem:[%s316 + $0x8] sm:$0xff]
        %v432 = vld [vmem:[%s316 + $0x10] sm:$0xff]
        %v433 = vld [vmem:[%s316 + $0x18] sm:$0xff]
        %v434 = vld [vmem:[%s316 + $0x20] sm:$0xff]
        %v435 = vld [vmem:[%s316 + $0x28] sm:$0xff]
        %v436 = vld [vmem:[%s316 + $0x30] sm:$0xff]
        %v437 = vld [vmem:[%s316 + $0x38] sm:$0xff]
        %v438 = vmul.f32 %v430, %v430
        %v439 = vmul.f32 %v431, %v431
        %v440 = vmul.f32 %v432, %v432
        %v441 = vmul.f32 %v433, %v433
        %v442 = vmul.f32 %v434, %v434
        %v443 = vmul.f32 %v435, %v435
        %v444 = vmul.f32 %v436, %v436
        %v445 = vmul.f32 %v437, %v437
        %vm446 = vcmask 261120
        %v447 = vsel %vm446, %v438, 0.0
        %448 = vadd.xlane.f32.xlu0 %v447
        %v449 = vpop.xlane.xlu0 %448
        %v450 = vsel %vm446, %v439, 0.0
        %451 = vadd.xlane.f32.xlu0 %v450
        %v452 = vpop.xlane.xlu0 %451
        %v453 = vsel %vm446, %v440, 0.0
        %454 = vadd.xlane.f32.xlu0 %v453
        %v455 = vpop.xlane.xlu0 %454
        %v456 = vsel %vm446, %v441, 0.0
        %457 = vadd.xlane.f32.xlu0 %v456
        %v458 = vpop.xlane.xlu0 %457
        %v459 = vsel %vm446, %v442, 0.0
        %460 = vadd.xlane.f32.xlu0 %v459
        %v461 = vpop.xlane.xlu0 %460
        %v462 = vsel %vm446, %v443, 0.0
        %463 = vadd.xlane.f32.xlu0 %v462
        %v464 = vpop.xlane.xlu0 %463
        %v465 = vsel %vm446, %v444, 0.0
        %466 = vadd.xlane.f32.xlu0 %v465
        %v467 = vpop.xlane.xlu0 %466
        %v468 = vsel %vm446, %v445, 0.0
        %469 = vadd.xlane.f32.xlu0 %v468
        %v470 = vpop.xlane.xlu0 %469
        %v471 = vmax.f32 %v449, 1e-08
        %v472 = vmax.f32 %v452, 1e-08
        %v473 = vmax.f32 %v455, 1e-08
        %v474 = vmax.f32 %v458, 1e-08
        %v475 = vmax.f32 %v461, 1e-08
        %v476 = vmax.f32 %v464, 1e-08
        %v477 = vmax.f32 %v467, 1e-08
        %v478 = vmax.f32 %v470, 1e-08
        %v479 = vrsqrt.pop %v471
        %v480 = vrsqrt.pop %v472
        %v481 = vrsqrt.pop %v473
        %v482 = vrsqrt.pop %v474
        %v483 = vrsqrt.pop %v475
        %v484 = vrsqrt.pop %v476
        %v485 = vrsqrt.pop %v477
        %v486 = vrsqrt.pop %v478
        %v487 = vmul.f32 %v479, 3.1622777
        %v488 = vmul.f32 %v480, 3.1622777
        %v489 = vmul.f32 %v481, 3.1622777
        %v490 = vmul.f32 %v482, 3.1622777
        %v491 = vmul.f32 %v483, 3.1622777
        %v492 = vmul.f32 %v484, 3.1622777
        %v493 = vmul.f32 %v485, 3.1622777
        %v494 = vmul.f32 %v486, 3.1622777
        %v495 = vmul.f32 %v430, %v487
        %v496 = vmul.f32 %v431, %v488
        %v497 = vmul.f32 %v432, %v489
        %v498 = vmul.f32 %v433, %v490
        %v499 = vmul.f32 %v434, %v491
        %v500 = vmul.f32 %v435, %v492
        %v501 = vmul.f32 %v436, %v493
        %v502 = vmul.f32 %v437, %v494
        %v503 = vld [vmem:[#allocation5] sm:$0xff]
        %v504 = vld [vmem:[#allocation5 + $0x8] sm:$0xff]
        %v505 = vld [vmem:[#allocation5 + $0x10] sm:$0xff]
        %v506 = vld [vmem:[#allocation5 + $0x18] sm:$0xff]
        %v508 = vsel %vm446, %v503, 0
        %v511 = vsel %vm446, %v504, 0
        %v514 = vsel %vm446, %v505, 0
        %v517 = vsel %vm446, %v506, 0
        %v520 = vsel %vm446, %v495, 0
        %v523 = vsel %vm446, %v496, 0
        %v526 = vsel %vm446, %v497, 0
        %v529 = vsel %vm446, %v498, 0
        %v532 = vsel %vm446, %v499, 0
        %v535 = vsel %vm446, %v500, 0
        %v538 = vsel %vm446, %v501, 0
        %v541 = vsel %vm446, %v502, 0
        %543 = vmatprep.subr.mxu0 0.0
        %544 = vmatpush1.xpose.msra.mxu0 %v520
        %545 = vmatprep.subr.mxu0 0.0
        %546 = vmatpush1.xpose.msra.mxu0 %v523
        %547 = vmatprep.subr.mxu0 0.0
        %548 = vmatpush1.xpose.msra.mxu0 %v526
        %549 = vmatprep.subr.mxu0 0.0
        %550 = vmatpush1.xpose.msra.mxu0 %v529
        %551 = vmatprep.subr.mxu0 0.0
        %552 = vmatpush1.xpose.msra.mxu0 %v532
        %553 = vmatprep.subr.mxu0 0.0
        %554 = vmatpush1.xpose.msra.mxu0 %v535
        %555 = vmatprep.subr.mxu0 0.0
        %556 = vmatpush1.xpose.msra.mxu0 %v538
        %557 = vmatprep.subr.mxu0 0.0
        %558 = vmatpush1.xpose.msra.mxu0 %v541
        %559 = vmatprep.subr.mxu0 0.0
        %560 = vmatpush1.xpose.msra.mxu0 0.0
        %561 = vmatprep.subr.mxu0 0.0
        %562 = vmatpush1.xpose.msra.mxu0 0.0
        %563 = vmatprep.subr.mxu0 0.0
        %564 = vmatpush1.xpose.msra.mxu0 0.0
        %565 = vmatprep.subr.mxu0 0.0
        %566 = vmatpush1.xpose.msra.mxu0 0.0
        %567 = vmatprep.subr.mxu0 0.0
        %568 = vmatpush1.xpose.msra.mxu0 0.0
        %569 = vmatprep.subr.mxu0 0.0
        %570 = vmatpush1.xpose.msra.mxu0 0.0
        %571 = vmatprep.subr.mxu0 0.0
        %572 = vmatpush1.xpose.msra.mxu0 0.0
        %573 = vmatprep.subr.mxu0 0.0
        %574 = vmatpush1.xpose.msra.mxu0 0.0
        %575 = vmatprep.subr.mxu0 0.0
        %576 = vmatpush1.xpose.msra.mxu0 0.0
        %577 = vmatprep.subr.mxu0 0.0
        %578 = vmatpush1.xpose.msra.mxu0 0.0
        %579 = vmatprep.subr.mxu0 0.0
        %580 = vmatpush1.xpose.msra.mxu0 0.0
        %581 = vmatprep.subr.mxu0 0.0
        %582 = vmatpush1.xpose.msra.mxu0 0.0
        %583 = vmatprep.subr.mxu0 0.0
        %584 = vmatpush1.xpose.msra.mxu0 0.0
        %585 = vmatprep.subr.mxu0 0.0
        %586 = vmatpush1.xpose.msra.mxu0 0.0
        %587 = vmatprep.subr.mxu0 0.0
        %588 = vmatpush1.xpose.msra.mxu0 0.0
        %589 = vmatprep.subr.mxu0 0.0
        %590 = vmatpush1.xpose.msra.mxu0 0.0
        %591 = vmatprep.subr.mxu0 0.0
        %592 = vmatpush1.xpose.msra.mxu0 0.0
        %593 = vmatprep.subr.mxu0 0.0
        %594 = vmatpush1.xpose.msra.mxu0 0.0
        %595 = vmatprep.subr.mxu0 0.0
        %596 = vmatpush1.xpose.msra.mxu0 0.0
        %597 = vmatprep.subr.mxu0 0.0
        %598 = vmatpush1.xpose.msra.mxu0 0.0
        %599 = vmatprep.subr.mxu0 0.0
        %600 = vmatpush1.xpose.msra.mxu0 0.0
        %601 = vmatprep.subr.mxu0 0.0
        %602 = vmatpush1.xpose.msra.mxu0 0.0
        %603 = vmatprep.subr.mxu0 0.0
        %604 = vmatpush1.xpose.msra.mxu0 0.0
        %605 = vmatprep.subr.mxu0 0.0
        %606 = vmatpush1.xpose.msra.mxu0 0.0
        %607 = vmatprep.mubr.f32.mxu0 0.0
        %608 = vmatmul.mubr.f32.gmra.mrb[0].mxu0 %v508
        %v609 = vpop.f32.mrb[0].mxu0
        %v610 = vadd.f32 0.0, %v609
        %v611 = vpop.f32.mrb[0].mxu0
        %612 = vmatprep.mubr.f32.mxu0 0.0
        %613 = vmatmul.mubr.f32.gmra.mrb[0].mxu0 %v511
        %v614 = vpop.f32.mrb[0].mxu0
        %v615 = vadd.f32 0.0, %v614
        %v616 = vpop.f32.mrb[0].mxu0
        %617 = vmatprep.mubr.f32.mxu0 0.0
        %618 = vmatmul.mubr.f32.gmra.mrb[0].mxu0 %v514
        %v619 = vpop.f32.mrb[0].mxu0
        %v620 = vadd.f32 0.0, %v619
        %v621 = vpop.f32.mrb[0].mxu0
        %622 = vmatprep.mubr.f32.mxu0 0.0
        %623 = vmatmul.mubr.f32.gmra.mrb[0].mxu0 %v517
        %v624 = vpop.f32.mrb[0].mxu0
        %v625 = vadd.f32 0.0, %v624
        %v626 = vpop.f32.mrb[0].mxu0
        %627 = vdwg.mxu0
        %s628 = sadd.s32 %s319, 64
        %p629 = scmp.lt.s32.totalorder %s318, %s628
        %s630 = sadd.s32 %s318, 32
        %p631 = scmp.lt.s32.totalorder %s319, %s630
        %p632 = pnand %p629, %p631
        %p633 = pneg %p632
        // Predicated region
        $region37: #{tpu_custom_call.1} parent=31 // pred_check
          _
        $region38: #{tpu_custom_call.1} parent=31 // pred_check_branch
          %635 = sbr.rel (%p632) target = $region40
        $region39: #{tpu_custom_call.1} parent=31 // pred_region
          %v636 = vlaneseq
          %v637 = vand.u32 %v636, 127
          %v638 = vlaneseq
          %v639 = vshrl.u32 %v638, 7
          %v640 = vadd.s32 %v639, 8
          %v641 = vadd.s32 %v639, 16
          %v642 = vadd.s32 %v639, 24
          %v643 = vsub.s32 %v637, %v639
          %v644 = vsub.s32 %v637, %v640
          %v645 = vsub.s32 %v637, %v641
          %v646 = vsub.s32 %v637, %v642
          %s647 = ssub.s32 %s318, %s319
          %v648 = vstv %s647
          %vm649 = vcmp.eq.s32.totalorder %v643, %v648
          %vm650 = vcmp.eq.s32.totalorder %v644, %v648
          %vm651 = vcmp.eq.s32.totalorder %v645, %v648
          %vm652 = vcmp.eq.s32.totalorder %v646, %v648
          %v653 = vsel %vm649, -1e+30, %v610
          %v654 = vsel %vm650, -1e+30, %v615
          %v655 = vsel %vm651, -1e+30, %v620
          %v656 = vsel %vm652, -1e+30, %v625
          %v657 = vld [vmem:[#allocation2] sm:$0xff]
          %v658 = vld [vmem:[#allocation2 + $0x8] sm:$0xff]
          %v659 = vld [vmem:[#allocation2 + $0x10] sm:$0xff]
          %v660 = vld [vmem:[#allocation2 + $0x18] sm:$0xff]
          %vm661 = vcmask 523264
          %v662 = vsel %vm661, %v653, -inf
          %663 = vmax.xlane.f32.xlu0 %v662
          %v664 = vpop.xlane.xlu0 %663
          %v665 = vsel %vm661, %v654, -inf
          %666 = vmax.xlane.f32.xlu0 %v665
          %v667 = vpop.xlane.xlu0 %666
          %v668 = vsel %vm661, %v655, -inf
          %669 = vmax.xlane.f32.xlu0 %v668
          %v670 = vpop.xlane.xlu0 %669
          %v671 = vsel %vm661, %v656, -inf
          %672 = vmax.xlane.f32.xlu0 %v671
          %v673 = vpop.xlane.xlu0 %672
          %v674 = vmax.f32 %v657, %v664
          %v675 = vmax.f32 %v658, %v667
          %v676 = vmax.f32 %v659, %v670
          %v677 = vmax.f32 %v660, %v673
          %679 = vset.pattern.permute.xlu0 0
          %680 = vperm.xlu0 %679, %v674
          %v681 = vpop.permute.xlu0 %680
          %684 = vset.pattern.permute.xlu0 0
          %685 = vperm.xlu0 %684, %v675
          %v686 = vpop.permute.xlu0 %685
          %689 = vset.pattern.permute.xlu0 0
          %690 = vperm.xlu0 %689, %v676
          %v691 = vpop.permute.xlu0 %690
          %694 = vset.pattern.permute.xlu0 0
          %695 = vperm.xlu0 %694, %v677
          %v696 = vpop.permute.xlu0 %695
          %v698 = vsub.f32 %v653, %v681
          %v699 = vsub.f32 %v654, %v686
          %v700 = vsub.f32 %v655, %v691
          %v701 = vsub.f32 %v656, %v696
          %v702 = vmul.f32 %v698, 1.442695
          %v703 = vpow.pop %v702
          %v704 = vmul.f32 %v699, 1.442695
          %v705 = vpow.pop %v704
          %v706 = vmul.f32 %v700, 1.442695
          %v707 = vpow.pop %v706
          %v708 = vmul.f32 %v701, 1.442695
          %v709 = vpow.pop %v708
          %v710 = vsub.f32 %v657, %v674
          %v711 = vsub.f32 %v658, %v675
          %v712 = vsub.f32 %v659, %v676
          %v713 = vsub.f32 %v660, %v677
          %v714 = vmul.f32 %v710, 1.442695
          %v715 = vpow.pop %v714
          %v716 = vmul.f32 %v711, 1.442695
          %v717 = vpow.pop %v716
          %v718 = vmul.f32 %v712, 1.442695
          %v719 = vpow.pop %v718
          %v720 = vmul.f32 %v713, 1.442695
          %v721 = vpow.pop %v720
          %v722 = vld [vmem:[#allocation3] sm:$0xff]
          %v723 = vld [vmem:[#allocation3 + $0x8] sm:$0xff]
          %v724 = vld [vmem:[#allocation3 + $0x10] sm:$0xff]
          %v725 = vld [vmem:[#allocation3 + $0x18] sm:$0xff]
          %v726 = vmul.f32 %v715, %v722
          %v727 = vmul.f32 %v717, %v723
          %v728 = vmul.f32 %v719, %v724
          %v729 = vmul.f32 %v721, %v725
          %v730 = vsel %vm661, %v703, 0.0
          %731 = vadd.xlane.f32.xlu0 %v730
          %v732 = vpop.xlane.xlu0 %731
          %v733 = vsel %vm661, %v705, 0.0
          %734 = vadd.xlane.f32.xlu0 %v733
          %v735 = vpop.xlane.xlu0 %734
          %v736 = vsel %vm661, %v707, 0.0
          %737 = vadd.xlane.f32.xlu0 %v736
          %v738 = vpop.xlane.xlu0 %737
          %v739 = vsel %vm661, %v709, 0.0
          %740 = vadd.xlane.f32.xlu0 %v739
          %v741 = vpop.xlane.xlu0 %740
          %v742 = vadd.f32 %v726, %v732
          %v743 = vadd.f32 %v727, %v735
          %v744 = vadd.f32 %v728, %v738
          %v745 = vadd.f32 %v729, %v741
          %vm746 = vcmask 7168
          %747 = vst.msk [vmem:[#allocation3] sm:$0xff] %vm746, %v742
          %748 = vst.msk [vmem:[#allocation3 + $0x8] sm:$0xff] %vm746, %v743
          %749 = vst.msk [vmem:[#allocation3 + $0x10] sm:$0xff] %vm746, %v744
          %750 = vst.msk [vmem:[#allocation3 + $0x18] sm:$0xff] %vm746, %v745
          %751 = vst.msk [vmem:[#allocation2] sm:$0xff] %vm746, %v674
          %752 = vst.msk [vmem:[#allocation2 + $0x8] sm:$0xff] %vm746, %v675
          %753 = vst.msk [vmem:[#allocation2 + $0x10] sm:$0xff] %vm746, %v676
          %754 = vst.msk [vmem:[#allocation2 + $0x18] sm:$0xff] %vm746, %v677
        $region40: #{tpu_custom_call.1} parent=31 // pred_fallthru
          _
        %p755 = pneg %p633
        // Predicated region
        $region41: #{tpu_custom_call.1} parent=31 // pred_check
          _
        $region42: #{tpu_custom_call.1} parent=31 // pred_check_branch
          %757 = sbr.rel (%p633) target = $region44
        $region43: #{tpu_custom_call.1} parent=31 // pred_region
          %v758 = vld [vmem:[#allocation2] sm:$0xff]
          %v759 = vld [vmem:[#allocation2 + $0x8] sm:$0xff]
          %v760 = vld [vmem:[#allocation2 + $0x10] sm:$0xff]
          %v761 = vld [vmem:[#allocation2 + $0x18] sm:$0xff]
          %vm762 = vcmask 523264
          %v763 = vsel %vm762, %v610, -inf
          %764 = vmax.xlane.f32.xlu0 %v763
          %v765 = vpop.xlane.xlu0 %764
          %v766 = vsel %vm762, %v615, -inf
          %767 = vmax.xlane.f32.xlu0 %v766
          %v768 = vpop.xlane.xlu0 %767
          %v769 = vsel %vm762, %v620, -inf
          %770 = vmax.xlane.f32.xlu0 %v769
          %v771 = vpop.xlane.xlu0 %770
          %v772 = vsel %vm762, %v625, -inf
          %773 = vmax.xlane.f32.xlu0 %v772
          %v774 = vpop.xlane.xlu0 %773
          %v775 = vmax.f32 %v758, %v765
          %v776 = vmax.f32 %v759, %v768
          %v777 = vmax.f32 %v760, %v771
          %v778 = vmax.f32 %v761, %v774
          %780 = vset.pattern.permute.xlu0 0
          %781 = vperm.xlu0 %780, %v775
          %v782 = vpop.permute.xlu0 %781
          %785 = vset.pattern.permute.xlu0 0
          %786 = vperm.xlu0 %785, %v776
          %v787 = vpop.permute.xlu0 %786
          %790 = vset.pattern.permute.xlu0 0
          %791 = vperm.xlu0 %790, %v777
          %v792 = vpop.permute.xlu0 %791
          %795 = vset.pattern.permute.xlu0 0
          %796 = vperm.xlu0 %795, %v778
          %v797 = vpop.permute.xlu0 %796
          %v799 = vsub.f32 %v610, %v782
          %v800 = vsub.f32 %v615, %v787
          %v801 = vsub.f32 %v620, %v792
          %v802 = vsub.f32 %v625, %v797
          %v803 = vmul.f32 %v799, 1.442695
          %v804 = vpow.pop %v803
          %v805 = vmul.f32 %v800, 1.442695
          %v806 = vpow.pop %v805
          %v807 = vmul.f32 %v801, 1.442695
          %v808 = vpow.pop %v807
          %v809 = vmul.f32 %v802, 1.442695
          %v810 = vpow.pop %v809
          %v811 = vsub.f32 %v758, %v775
          %v812 = vsub.f32 %v759, %v776
          %v813 = vsub.f32 %v760, %v777
          %v814 = vsub.f32 %v761, %v778
          %v815 = vmul.f32 %v811, 1.442695
          %v816 = vpow.pop %v815
          %v817 = vmul.f32 %v812, 1.442695
          %v818 = vpow.pop %v817
          %v819 = vmul.f32 %v813, 1.442695
          %v820 = vpow.pop %v819
          %v821 = vmul.f32 %v814, 1.442695
          %v822 = vpow.pop %v821
          %v823 = vld [vmem:[#allocation3] sm:$0xff]
          %v824 = vld [vmem:[#allocation3 + $0x8] sm:$0xff]
          %v825 = vld [vmem:[#allocation3 + $0x10] sm:$0xff]
          %v826 = vld [vmem:[#allocation3 + $0x18] sm:$0xff]
          %v827 = vmul.f32 %v816, %v823
          %v828 = vmul.f32 %v818, %v824
          %v829 = vmul.f32 %v820, %v825
          %v830 = vmul.f32 %v822, %v826
          %v831 = vsel %vm762, %v804, 0.0
          %832 = vadd.xlane.f32.xlu0 %v831
          %v833 = vpop.xlane.xlu0 %832
          %v834 = vsel %vm762, %v806, 0.0
          %835 = vadd.xlane.f32.xlu0 %v834
          %v836 = vpop.xlane.xlu0 %835
          %v837 = vsel %vm762, %v808, 0.0
          %838 = vadd.xlane.f32.xlu0 %v837
          %v839 = vpop.xlane.xlu0 %838
          %v840 = vsel %vm762, %v810, 0.0
          %841 = vadd.xlane.f32.xlu0 %v840
          %v842 = vpop.xlane.xlu0 %841
          %v843 = vadd.f32 %v827, %v833
          %v844 = vadd.f32 %v828, %v836
          %v845 = vadd.f32 %v829, %v839
          %v846 = vadd.f32 %v830, %v842
          %vm847 = vcmask 7168
          %848 = vst.msk [vmem:[#allocation3] sm:$0xff] %vm847, %v843
          %849 = vst.msk [vmem:[#allocation3 + $0x8] sm:$0xff] %vm847, %v844
          %850 = vst.msk [vmem:[#allocation3 + $0x10] sm:$0xff] %vm847, %v845
          %851 = vst.msk [vmem:[#allocation3 + $0x18] sm:$0xff] %vm847, %v846
          %852 = vst.msk [vmem:[#allocation2] sm:$0xff] %vm847, %v775
          %853 = vst.msk [vmem:[#allocation2 + $0x8] sm:$0xff] %vm847, %v776
          %854 = vst.msk [vmem:[#allocation2 + $0x10] sm:$0xff] %vm847, %v777
          %855 = vst.msk [vmem:[#allocation2 + $0x18] sm:$0xff] %vm847, %v778
        $region44: #{tpu_custom_call.1} parent=31 // pred_fallthru
          _
        %p856 = scmp.eq.s32.totalorder %s22, 1
        // Predicated region
        $region45: #{tpu_custom_call.1} parent=31 // pred_check
          %p857 = pneg %p856
        $region46: #{tpu_custom_call.1} parent=31 // pred_check_branch
          %859 = sbr.rel (%p857) target = $region48
        $region47: #{tpu_custom_call.1} parent=31 // pred_region
          %v860 = vld [vmem:[#allocation2] sm:$0xff]
          %v861 = vld [vmem:[#allocation2 + $0x8] sm:$0xff]
          %v862 = vld [vmem:[#allocation2 + $0x10] sm:$0xff]
          %v863 = vld [vmem:[#allocation2 + $0x18] sm:$0xff]
          %v864 = vld [vmem:[#allocation3] sm:$0xff]
          %v865 = vld [vmem:[#allocation3 + $0x8] sm:$0xff]
          %v866 = vld [vmem:[#allocation3 + $0x10] sm:$0xff]
          %v867 = vld [vmem:[#allocation3 + $0x18] sm:$0xff]
          %v868 = vlog2.pop %v864
          %v869 = vmul.f32 %v868, 0.6931472
          %v870 = vlog2.pop %v865
          %v871 = vmul.f32 %v870, 0.6931472
          %v872 = vlog2.pop %v866
          %v873 = vmul.f32 %v872, 0.6931472
          %v874 = vlog2.pop %v867
          %v875 = vmul.f32 %v874, 0.6931472
          %v876 = vadd.f32 %v860, %v869
          %v877 = vadd.f32 %v861, %v871
          %v878 = vadd.f32 %v862, %v873
          %v879 = vadd.f32 %v863, %v875
          %v880 = vld [vmem:[#allocation4] sm:$0xff]
          %v881 = vld [vmem:[#allocation4 + $0x8] sm:$0xff]
          %v882 = vld [vmem:[#allocation4 + $0x10] sm:$0xff]
          %v883 = vld [vmem:[#allocation4 + $0x18] sm:$0xff]
          %v884 = vsub.f32 %v876, %v880
          %v885 = vsub.f32 %v877, %v881
          %v886 = vsub.f32 %v878, %v882
          %v887 = vsub.f32 %v879, %v883
          %vm888 = vcmask 7168
          %v889 = vsel %vm888, %v884, 0.0
          %v890 = vsel %vm888, %v885, 0.0
          %v891 = vadd.f32 %v889, %v890
          %v892 = vsel %vm888, %v886, 0.0
          %v893 = vadd.f32 %v891, %v892
          %v894 = vsel %vm888, %v887, 0.0
          %v895 = vadd.f32 %v893, %v894
          %v896 = vrot.slane %v895, 4
          %v897 = vadd.f32 %v895, %v896
          %v898 = vrot.slane %v897, 2
          %v899 = vadd.f32 %v897, %v898
          %v900 = vrot.slane %v899, 1
          %v901 = vadd.f32 %v899, %v900
          %903 = vset.pattern.permute.xlu0 0
          %904 = vperm.xlu0 %903, %v901
          %v905 = vpop.permute.xlu0 %904
          %907 = vst [vmem:[%s273] sm:$0xff] %v905
        $region48: #{tpu_custom_call.1} parent=31 // pred_fallthru
          _
        %s908 = sand.u32 %s141, 1
        %s909 = scalar_lea.sflag [#allocation7], %s908
        %s910 = sand.u32 %s141, 1
        %s911 = smul.addr %s910, 8
        %s912 = scalar_lea.vmem [#allocation6], %s911
        // Predicated region
        $region49: #{tpu_custom_call.1} parent=31 // pred_check
          %p913 = pneg %p151
        $region50: #{tpu_custom_call.1} parent=31 // pred_check_branch
          %915 = sbr.rel (%p913) target = $region52
        $region51: #{tpu_custom_call.1} parent=31 // pred_region
          %s917 = ssub.s32 128, 128
          %918 = vsyncadd %s909, %s917
          %s919 = smul.addr %s21, 128
          %s920 = scalar_lea.hbm %s3, %s919
          %s922 = sshll.u32 %s912, 4
          %s923 = int_to_ptr.vmem [resolvable:$true] %s922
          %925 = dma.vmem_to_hbm [thread:$0]  %s923, 128, %s920, %s909
        $region52: #{tpu_custom_call.1} parent=31 // pred_fallthru
          _
      $region32: #{tpu_custom_call.1} parent=5 // pred_fallthru
        _
      %p926 = scmp.le.s32.totalorder 2, %s12
      // Predicated region
      $region53: #{tpu_custom_call.1} parent=5 // pred_check
        %p927 = pneg %p926
      $region54: #{tpu_custom_call.1} parent=5 // pred_check_branch
        %929 = sbr.rel (%p927) target = $region56
      $region55: #{tpu_custom_call.1} parent=5 // pred_region
        %s930 = ssub.s32 %s12, 2
        // Predicated region
        $region57: #{tpu_custom_call.1} parent=55 // pred_check
          %p931 = pneg %p157
        $region58: #{tpu_custom_call.1} parent=55 // pred_check_branch
          %933 = sbr.rel (%p931) target = $region60
        $region59: #{tpu_custom_call.1} parent=55 // pred_region
          %s934 = sand.u32 %s142, 1
          %s935 = scalar_lea.sflag [#allocation7], %s934
          %s936 = sand.u32 %s142, 1
          %s937 = smul.addr %s936, 8
          %s938 = scalar_lea.vmem [#allocation6], %s937
          %939 = dma.done %s935, 128
        $region60: #{tpu_custom_call.1} parent=55 // pred_fallthru
          _
      $region56: #{tpu_custom_call.1} parent=5 // pred_fallthru
        _
    $region6: #{tpu_custom_call.1} parent=1 // loop_footer
      %s16 = sadd.s32 1, %s12
    $region7: #{tpu_custom_call.1} parent=1 // loop_footer_branch
      %11 = sbr.rel target = $region3
    $region8: #{tpu_custom_call.1} parent=1 // loop_exit
      _
    %940 = vsyncpa [#allocation7], 1
    %s941 = scalar_lea.sflag [#allocation7], 1
    %942 = vsyncpa %s941, 1

</llo_original>
